<compile_context>
chip_gen: v7x
topology: tpu7x:2x2x1
jax: 0.10.0
libtpu: 0.0.40
codegen_flags: <defaults>
</compile_context>

<pallas_src>
import functools

import jax
import jax.numpy as jnp
from jax.experimental import pallas as pl
from jax.experimental.pallas import tpu as pltpu


def _round_up(x, m):
    return ((x + m - 1) // m) * m


def _pick_batch_tile(B, *, granule, max_tile=512, min_steps_if_big=2):
    """Pad-aware batch tile: minimize padded rows while keeping
    (a) >= 2 grid steps for medium/large batches (v7x 2-TC sharding) and
    (b) tiles no larger than max_tile (keeps VMEM + pipeline sane)."""
    min_steps = min_steps_if_big if B > 16 else 1
    steps = max(min_steps, -(-B // max_tile))          # ceil(B / max_tile)
    tile = _round_up(-(-B // steps), granule)           # ceil(B / steps) -> granule
    tile = max(tile, granule)
    return tile, steps


def _mlp_kernel(x_ref,
                w0_ref, b0_ref,
                w1_ref, b1_ref,
                w2_ref, b2_ref,
                w3_ref, b3_ref,
                w4_ref, b4_ref,
                o_ref,
                *, compute_dtype):
    """Fused MLP on the current batch tile. Weights are already in
    compute_dtype (pre-cast in the wrapper); biases are f32 and are added to
    the f32 MXU accumulator."""

    def dense_relu(h, w_ref, b_ref):
        y = jnp.dot(h, w_ref[...], preferred_element_type=jnp.float32)
        y = jnp.maximum(y + b_ref[...], 0.0)
        return y.astype(compute_dtype)

    h = x_ref[...].astype(compute_dtype)
    h = dense_relu(h, w0_ref, b0_ref)   # fc0 + ReLU
    h = dense_relu(h, w1_ref, b1_ref)   # fc1 + ReLU
    h = dense_relu(h, w2_ref, b2_ref)   # fc2 + ReLU
    h = dense_relu(h, w3_ref, b3_ref)   # fc3 + ReLU
    # fc4 (lane-padded head, no activation) -> f32 output
    y = jnp.dot(h, w4_ref[...], preferred_element_type=jnp.float32) + b4_ref[...]
    o_ref[...] = y.astype(o_ref.dtype)


def quadratic_nn_forward(x, params, *, compute_dtype=jnp.bfloat16, max_batch_tile=512):
    """Run the fused MLP kernel. x: [B, input_size] float32.

    Default compute_dtype=bf16: matmuls run on the bf16 MXU path with f32
    accumulation (expect ~1e-2 relative error vs the f32 reference).
    Pass compute_dtype=jnp.float32 for reference-accurate results.
    """
    (w0, b0), (w1, b1), (w2, b2), (w3, b3), (w4, b4) = params
    B, in_size = x.shape
    out_size = w4.shape[1]

    # --- Lane-dense output: pad the head's output dim to a multiple of 128 so
    # stores are full-width (unmasked) and the output DMA is lane-dense.
    out_pad = _round_up(out_size, 128)
    if out_pad != out_size:
        w4 = jnp.pad(w4, ((0, 0), (0, out_pad - out_size)))
        b4 = jnp.pad(b4, ((0, 0), (0, out_pad - out_size)))

    # --- Pre-cast weights ONCE in the wrapper (halves weight DMA in bf16 mode
    # and removes the per-grid-step in-kernel cast). Biases stay f32.
    layers = tuple((w.astype(compute_dtype), b.astype(jnp.float32))
                   for (w, b) in ((w0, b0), (w1, b1), (w2, b2), (w3, b3), (w4, b4)))

    # --- Pad-aware batch tiling (granule 16 for bf16 row packing, 8 for f32).
    granule = 16 if compute_dtype == jnp.bfloat16 else 8
    batch_tile, steps = _pick_batch_tile(B, granule=granule, max_tile=max_batch_tile)
    B_pad = batch_tile * steps
    if B_pad != B:
        x = jnp.pad(x, ((0, B_pad - B), (0, 0)))

    grid = (steps,)

    # Weights/biases: full-array blocks with constant index_map -> stay
    # resident in VMEM across grid steps (no per-step re-DMA).
    def full_spec(arr):
        nd = arr.ndim
        return pl.BlockSpec(arr.shape, lambda i, _nd=nd: (0,) * _nd)

    in_specs = [pl.BlockSpec((batch_tile, in_size), lambda i: (i, 0))]
    for w, b in layers:
        in_specs.append(full_spec(w))
        in_specs.append(full_spec(b))

    out_spec = pl.BlockSpec((batch_tile, out_pad), lambda i: (i, 0))

    # Advisory cost estimate (real, unpadded dims).
    flops = 0
    bytes_accessed = x.size * x.dtype.itemsize + B * out_size * 4
    for w, b in layers:
        flops += 2 * B * w.shape[0] * w.shape[1]
        bytes_accessed += w.size * w.dtype.itemsize + b.size * b.dtype.itemsize

    kernel = functools.partial(_mlp_kernel, compute_dtype=compute_dtype)

    flat_args = [x]
    for w, b in layers:
        flat_args.extend((w, b))

    out = pl.pallas_call(
        kernel,
        out_shape=jax.ShapeDtypeStruct((B_pad, out_pad), jnp.float32),
        grid_spec=pltpu.PrefetchScalarGridSpec(
            num_scalar_prefetch=0,
            grid=grid,
            in_specs=in_specs,
            out_specs=out_spec,
        ),
        compiler_params=pltpu.CompilerParams(
            dimension_semantics=("parallel",),
        ),
        cost_estimate=pl.CostEstimate(
            flops=flops, transcendentals=0, bytes_accessed=bytes_accessed),
    )(*flat_args)

    # TODO(synk): callers that can consume the (B_pad, 128) padded f32 slab
    # directly can skip this wrapper slice (it is a second XLA copy).
    return out[:B, :out_size]


def init_quadratic_nn_params(key, input_size, output_size):
    """Kaiming-normal (fan_in, relu) weights, zero biases — matches init_weights()."""
    layer_dims = [(input_size, 256), (256, 256), (256, 128), (128, 128),
                  (128, output_size)]
    params = []
    for (fan_in, fan_out) in layer_dims:
        key, sub = jax.random.split(key)
        std = jnp.sqrt(2.0 / fan_in)  # kaiming_normal_, mode='fan_in', relu gain
        # Stored as [in, out] (transpose of PyTorch's [out, in]); same distribution.
        w = jax.random.normal(sub, (fan_in, fan_out), dtype=jnp.float32) * std
        b = jnp.zeros((1, fan_out), dtype=jnp.float32)
        params.append((w, b))
    return params


def reference_forward(x, params):
    """Pure-JAX f32 reference for correctness checking."""
    h = x
    for i, (w, b) in enumerate(params):
        h = h @ w + b
        if i < len(params) - 1:
            h = jnp.maximum(h, 0.0)
    return h


if __name__ == "__main__":
    input_size = 32
    output_size = 8
    batch = 2

    key = jax.random.PRNGKey(0)
    key, xkey = jax.random.split(key)
    x = jax.random.normal(xkey, (batch, input_size), dtype=jnp.float32)

    params = init_quadratic_nn_params(key, input_size, output_size)
    y_ref = reference_forward(x, params)

    # f32 compute path — matches the PyTorch/JAX reference tightly.
    y_f32 = jax.block_until_ready(
        quadratic_nn_forward(x, params, compute_dtype=jnp.float32))
    assert y_f32.shape == (batch, output_size)
    assert jnp.allclose(y_f32, y_ref, atol=1e-4, rtol=1e-4), "f32 mismatch vs reference"

    # Default bf16 compute path (MXU-native) — looser tolerance by design.
    y_bf16 = jax.block_until_ready(quadratic_nn_forward(x, params))
    assert y_bf16.shape == (batch, output_size)
    assert jnp.allclose(y_bf16, y_ref, atol=5e-2, rtol=5e-2), "bf16 mismatch vs reference"

    # Larger batch: exercises pad-aware multi-step tiling (B=600 -> 2 x 304 rows)
    # and the lane-padded output path, on the default bf16 path.
    key, xkey2 = jax.random.split(key)
    x_big = jax.random.normal(xkey2, (600, input_size), dtype=jnp.float32)
    y_big = jax.block_until_ready(quadratic_nn_forward(x_big, params))
    y_big_ref = reference_forward(x_big, params)
    assert y_big.shape == (600, output_size)
    assert jnp.allclose(y_big, y_big_ref, atol=5e-2, rtol=5e-2), "bf16 mismatch (big batch)"

    # And the big batch on the f32 path for a tight check of the tiling logic.
    y_big_f32 = jax.block_until_ready(
        quadratic_nn_forward(x_big, params, compute_dtype=jnp.float32))
    assert jnp.allclose(y_big_f32, y_big_ref, atol=1e-4, rtol=1e-4), "f32 mismatch (big batch)"

    print("KERNEL_OK")
</pallas_src>

<mosaic_0001>
module attributes {stable_mosaic.version = 11 : i64} {
  func.func @_mlp_kernel(%arg0: i32, %arg1: memref<8x32xf32, #tpu.memory_space<vmem>>, %arg2: memref<32x256xf32, #tpu.memory_space<vmem>>, %arg3: memref<1x256xf32, #tpu.memory_space<vmem>>, %arg4: memref<256x256xf32, #tpu.memory_space<vmem>>, %arg5: memref<1x256xf32, #tpu.memory_space<vmem>>, %arg6: memref<256x128xf32, #tpu.memory_space<vmem>>, %arg7: memref<1x128xf32, #tpu.memory_space<vmem>>, %arg8: memref<128x128xf32, #tpu.memory_space<vmem>>, %arg9: memref<1x128xf32, #tpu.memory_space<vmem>>, %arg10: memref<128x128xf32, #tpu.memory_space<vmem>>, %arg11: memref<1x128xf32, #tpu.memory_space<vmem>>, %arg12: memref<8x128xf32, #tpu.memory_space<vmem>>) attributes {dimension_semantics = [#tpu.dimension_semantics<parallel>], iteration_bounds = array<i64: 1>, scalar_prefetch = 0 : i64, scratch_operands = 0 : i64, tpu.core_type = #tpu.core_type<tc>, window_params = [{transform_indices = @transform_0, window_bounds = array<i64: 8, 32>}, {pipeline_mode = #tpu.pipeline_mode<synchronous>, transform_indices = @transform_1, window_bounds = array<i64: 32, 256>}, {pipeline_mode = #tpu.pipeline_mode<synchronous>, transform_indices = @transform_2, window_bounds = array<i64: 1, 256>}, {pipeline_mode = #tpu.pipeline_mode<synchronous>, transform_indices = @transform_3, window_bounds = array<i64: 256, 256>}, {pipeline_mode = #tpu.pipeline_mode<synchronous>, transform_indices = @transform_4, window_bounds = array<i64: 1, 256>}, {pipeline_mode = #tpu.pipeline_mode<synchronous>, transform_indices = @transform_5, window_bounds = array<i64: 256, 128>}, {pipeline_mode = #tpu.pipeline_mode<synchronous>, transform_indices = @transform_6, window_bounds = array<i64: 1, 128>}, {pipeline_mode = #tpu.pipeline_mode<synchronous>, transform_indices = @transform_7, window_bounds = array<i64: 128, 128>}, {pipeline_mode = #tpu.pipeline_mode<synchronous>, transform_indices = @transform_8, window_bounds = array<i64: 1, 128>}, {pipeline_mode = #tpu.pipeline_mode<synchronous>, transform_indices = @transform_9, window_bounds = array<i64: 128, 128>}, {pipeline_mode = #tpu.pipeline_mode<synchronous>, transform_indices = @transform_10, window_bounds = array<i64: 1, 128>}, {transform_indices = @transform_11, window_bounds = array<i64: 8, 128>}]} {
    %c0 = arith.constant 0 : index
    %c0_0 = arith.constant 0 : index
    %0 = vector.load %arg1[%c0, %c0_0] : memref<8x32xf32, #tpu.memory_space<vmem>>, vector<8x32xf32>
    %c0_1 = arith.constant 0 : index
    %c0_2 = arith.constant 0 : index
    %1 = vector.load %arg2[%c0_1, %c0_2] : memref<32x256xf32, #tpu.memory_space<vmem>>, vector<32x256xf32>
    %cst = arith.constant dense<0.000000e+00> : vector<8x256xf32>
    %2 = tpu.matmul %0, %1, %cst {dimension_numbers = #tpu.dot_dimension_numbers<[1], [0], [0], [1], [0, 0, 1, 1], [], []>} : vector<8x32xf32>, vector<32x256xf32>, vector<8x256xf32> -> vector<8x256xf32>
    %c0_3 = arith.constant 0 : index
    %c0_4 = arith.constant 0 : index
    %3 = vector.load %arg3[%c0_3, %c0_4] : memref<1x256xf32, #tpu.memory_space<vmem>>, vector<1x256xf32>
    %4 = vector.broadcast %3 : vector<1x256xf32> to vector<8x256xf32>
    %5 = arith.addf %2, %4 : vector<8x256xf32>
    %cst_5 = arith.constant 0.000000e+00 : f32
    %6 = vector.broadcast %cst_5 : f32 to vector<8x256xf32>
    %7 = arith.maximumf %5, %6 : vector<8x256xf32>
    %c0_6 = arith.constant 0 : index
    %c0_7 = arith.constant 0 : index
    %8 = vector.load %arg4[%c0_6, %c0_7] : memref<256x256xf32, #tpu.memory_space<vmem>>, vector<256x256xf32>
    %cst_8 = arith.constant dense<0.000000e+00> : vector<8x256xf32>
    %9 = tpu.matmul %7, %8, %cst_8 {dimension_numbers = #tpu.dot_dimension_numbers<[1], [0], [0], [1], [0, 0, 1, 1], [], []>} : vector<8x256xf32>, vector<256x256xf32>, vector<8x256xf32> -> vector<8x256xf32>
    %c0_9 = arith.constant 0 : index
    %c0_10 = arith.constant 0 : index
    %10 = vector.load %arg5[%c0_9, %c0_10] : memref<1x256xf32, #tpu.memory_space<vmem>>, vector<1x256xf32>
    %11 = vector.broadcast %10 : vector<1x256xf32> to vector<8x256xf32>
    %12 = arith.addf %9, %11 : vector<8x256xf32>
    %cst_11 = arith.constant 0.000000e+00 : f32
    %13 = vector.broadcast %cst_11 : f32 to vector<8x256xf32>
    %14 = arith.maximumf %12, %13 : vector<8x256xf32>
    %c0_12 = arith.constant 0 : index
    %c0_13 = arith.constant 0 : index
    %15 = vector.load %arg6[%c0_12, %c0_13] : memref<256x128xf32, #tpu.memory_space<vmem>>, vector<256x128xf32>
    %cst_14 = arith.constant dense<0.000000e+00> : vector<8x128xf32>
    %16 = tpu.matmul %14, %15, %cst_14 {dimension_numbers = #tpu.dot_dimension_numbers<[1], [0], [0], [1], [0, 0, 1, 1], [], []>} : vector<8x256xf32>, vector<256x128xf32>, vector<8x128xf32> -> vector<8x128xf32>
    %c0_15 = arith.constant 0 : index
    %c0_16 = arith.constant 0 : index
    %17 = vector.load %arg7[%c0_15, %c0_16] : memref<1x128xf32, #tpu.memory_space<vmem>>, vector<1x128xf32>
    %18 = vector.broadcast %17 : vector<1x128xf32> to vector<8x128xf32>
    %19 = arith.addf %16, %18 : vector<8x128xf32>
    %cst_17 = arith.constant 0.000000e+00 : f32
    %20 = vector.broadcast %cst_17 : f32 to vector<8x128xf32>
    %21 = arith.maximumf %19, %20 : vector<8x128xf32>
    %c0_18 = arith.constant 0 : index
    %c0_19 = arith.constant 0 : index
    %22 = vector.load %arg8[%c0_18, %c0_19] : memref<128x128xf32, #tpu.memory_space<vmem>>, vector<128x128xf32>
    %cst_20 = arith.constant dense<0.000000e+00> : vector<8x128xf32>
    %23 = tpu.matmul %21, %22, %cst_20 {dimension_numbers = #tpu.dot_dimension_numbers<[1], [0], [0], [1], [0, 0, 1, 1], [], []>} : vector<8x128xf32>, vector<128x128xf32>, vector<8x128xf32> -> vector<8x128xf32>
    %c0_21 = arith.constant 0 : index
    %c0_22 = arith.constant 0 : index
    %24 = vector.load %arg9[%c0_21, %c0_22] : memref<1x128xf32, #tpu.memory_space<vmem>>, vector<1x128xf32>
    %25 = vector.broadcast %24 : vector<1x128xf32> to vector<8x128xf32>
    %26 = arith.addf %23, %25 : vector<8x128xf32>
    %cst_23 = arith.constant 0.000000e+00 : f32
    %27 = vector.broadcast %cst_23 : f32 to vector<8x128xf32>
    %28 = arith.maximumf %26, %27 : vector<8x128xf32>
    %c0_24 = arith.constant 0 : index
    %c0_25 = arith.constant 0 : index
    %29 = vector.load %arg10[%c0_24, %c0_25] : memref<128x128xf32, #tpu.memory_space<vmem>>, vector<128x128xf32>
    %cst_26 = arith.constant dense<0.000000e+00> : vector<8x128xf32>
    %30 = tpu.matmul %28, %29, %cst_26 {dimension_numbers = #tpu.dot_dimension_numbers<[1], [0], [0], [1], [0, 0, 1, 1], [], []>} : vector<8x128xf32>, vector<128x128xf32>, vector<8x128xf32> -> vector<8x128xf32>
    %c0_27 = arith.constant 0 : index
    %c0_28 = arith.constant 0 : index
    %31 = vector.load %arg11[%c0_27, %c0_28] : memref<1x128xf32, #tpu.memory_space<vmem>>, vector<1x128xf32>
    %32 = vector.broadcast %31 : vector<1x128xf32> to vector<8x128xf32>
    %33 = arith.addf %30, %32 : vector<8x128xf32>
    %c0_29 = arith.constant 0 : index
    %c0_30 = arith.constant 0 : index
    %34 = vector.load %arg12[%c0_29, %c0_30] : memref<8x128xf32, #tpu.memory_space<vmem>>, vector<8x128xf32>
    tpu.vector_store %arg12[%c0_29, %c0_30], %33 {strides = array<i32>} : memref<8x128xf32, #tpu.memory_space<vmem>>, vector<8x128xf32>,
    return
  }
  func.func @transform_0(%arg0: i32) -> (i32, i32) {
    %c0_i32 = arith.constant 0 : i32
    %c0_i32_0 = arith.constant 0 : i32
    return %arg0, %c0_i32 : i32, i32
  }
  func.func @transform_1(%arg0: i32) -> (i32, i32) {
    %c0_i32 = arith.constant 0 : i32
    %c0_i32_0 = arith.constant 0 : i32
    %c0_i32_1 = arith.constant 0 : i32
    return %c0_i32, %c0_i32_0 : i32, i32
  }
  func.func @transform_2(%arg0: i32) -> (i32, i32) {
    %c0_i32 = arith.constant 0 : i32
    %c0_i32_0 = arith.constant 0 : i32
    %c0_i32_1 = arith.constant 0 : i32
    return %c0_i32, %c0_i32_0 : i32, i32
  }
  func.func @transform_3(%arg0: i32) -> (i32, i32) {
    %c0_i32 = arith.constant 0 : i32
    %c0_i32_0 = arith.constant 0 : i32
    %c0_i32_1 = arith.constant 0 : i32
    return %c0_i32, %c0_i32_0 : i32, i32
  }
  func.func @transform_4(%arg0: i32) -> (i32, i32) {
    %c0_i32 = arith.constant 0 : i32
    %c0_i32_0 = arith.constant 0 : i32
    %c0_i32_1 = arith.constant 0 : i32
    return %c0_i32, %c0_i32_0 : i32, i32
  }
  func.func @transform_5(%arg0: i32) -> (i32, i32) {
    %c0_i32 = arith.constant 0 : i32
    %c0_i32_0 = arith.constant 0 : i32
    %c0_i32_1 = arith.constant 0 : i32
    return %c0_i32, %c0_i32_0 : i32, i32
  }
  func.func @transform_6(%arg0: i32) -> (i32, i32) {
    %c0_i32 = arith.constant 0 : i32
    %c0_i32_0 = arith.constant 0 : i32
    %c0_i32_1 = arith.constant 0 : i32
    return %c0_i32, %c0_i32_0 : i32, i32
  }
  func.func @transform_7(%arg0: i32) -> (i32, i32) {
    %c0_i32 = arith.constant 0 : i32
    %c0_i32_0 = arith.constant 0 : i32
    %c0_i32_1 = arith.constant 0 : i32
    return %c0_i32, %c0_i32_0 : i32, i32
  }
  func.func @transform_8(%arg0: i32) -> (i32, i32) {
    %c0_i32 = arith.constant 0 : i32
    %c0_i32_0 = arith.constant 0 : i32
    %c0_i32_1 = arith.constant 0 : i32
    return %c0_i32, %c0_i32_0 : i32, i32
  }
  func.func @transform_9(%arg0: i32) -> (i32, i32) {
    %c0_i32 = arith.constant 0 : i32
    %c0_i32_0 = arith.constant 0 : i32
    %c0_i32_1 = arith.constant 0 : i32
    return %c0_i32, %c0_i32_0 : i32, i32
  }
  func.func @transform_10(%arg0: i32) -> (i32, i32) {
    %c0_i32 = arith.constant 0 : i32
    %c0_i32_0 = arith.constant 0 : i32
    %c0_i32_1 = arith.constant 0 : i32
    return %c0_i32, %c0_i32_0 : i32, i32
  }
  func.func @transform_11(%arg0: i32) -> (i32, i32) {
    %c0_i32 = arith.constant 0 : i32
    %c0_i32_0 = arith.constant 0 : i32
    return %arg0, %c0_i32 : i32, i32
  }
}

</mosaic_0001>

<llo_original>
// kernel: tpu_custom_call.1
$region0: #{tpu_custom_call.1}
  #allocation0 [shape = 'u32[]', space=smem, size = 0x4, offset = 0x4, fixed_abs, tag = 'smem constant byte address 0x4 - core index']
  #allocation1 [shape = 'u32[144,128]{1,0:T(1,128)}', space=vmem, size = 0x12000, scoped, tag = 'internal scratch']
  %s0 = inlined_call_operand.hbm [shape: f32[8,32], index: 0, kind: input, shape index: {}]
  %s1 = inlined_call_operand.hbm [shape: f32[32,256], index: 1, kind: input, shape index: {}]
  %s2 = inlined_call_operand.vmem [shape: f32[1,256], index: 2, kind: input, shape index: {}]
  %s3 = inlined_call_operand.hbm [shape: f32[256,256], index: 3, kind: input, shape index: {}]
  %s4 = inlined_call_operand.vmem [shape: f32[1,256], index: 4, kind: input, shape index: {}]
  %s5 = inlined_call_operand.hbm [shape: f32[256,128], index: 5, kind: input, shape index: {}]
  %s6 = inlined_call_operand.vmem [shape: f32[1,128], index: 6, kind: input, shape index: {}]
  %s7 = inlined_call_operand.hbm [shape: f32[128,128], index: 7, kind: input, shape index: {}]
  %s8 = inlined_call_operand.vmem [shape: f32[1,128], index: 8, kind: input, shape index: {}]
  %s9 = inlined_call_operand.hbm [shape: f32[128,128], index: 9, kind: input, shape index: {}]
  %s10 = inlined_call_operand.vmem [shape: f32[1,128], index: 10, kind: input, shape index: {}]
  %s11 = inlined_call_operand.hbm [shape: f32[8,128], index: 11, kind: output, shape index: {}]
  %s12 = sld [smem:[#allocation0]]
  $region78: #{tpu_custom_call.1} parent=0
    _
  %s14 = ssub.s32 1, %s12
  %s15 = scalar_select 0, %s14, %s12
  $region1: #{tpu_custom_call.1} parent=0
    #allocation2 [shape = 'u8[4096]{0}', space=vmem, size = 0x1000, scoped, tag = 'input window, operand 0, single buffered']
    #allocation3 [shape = 's32[1]{0}', space=sflag, size = 0x4, scoped, tag = 'scoped memory for tpu_custom_call.1']
    #allocation4 [shape = 's32[1]{0}', space=sflag, size = 0x4, scoped, tag = 'scoped memory for tpu_custom_call.1']
    #allocation5 [shape = 'u8[32768]{0}', space=vmem, size = 0x8000, scoped, tag = 'input window, operand 1, single buffered']
    #allocation6 [shape = 's32[1]{0}', space=sflag, size = 0x4, scoped, tag = 'scoped memory for tpu_custom_call.1']
    #allocation7 [shape = 'u8[262144]{0}', space=vmem, size = 0x40000, scoped, tag = 'input window, operand 3, single buffered']
    #allocation8 [shape = 'u8[131072]{0}', space=vmem, size = 0x20000, scoped, tag = 'input window, operand 5, single buffered']
    #allocation9 [shape = 's32[1]{0}', space=sflag, size = 0x4, scoped, tag = 'scoped memory for tpu_custom_call.1']
    #allocation10 [shape = 'u8[65536]{0}', space=vmem, size = 0x10000, scoped, tag = 'input window, operand 7, single buffered']
    #allocation11 [shape = 'u8[65536]{0}', space=vmem, size = 0x10000, scoped, tag = 'input window, operand 9, single buffered']
    #allocation12 [shape = 's32[1]{0}', space=sflag, size = 0x4, scoped, tag = 'scoped memory for tpu_custom_call.1']
    #allocation13 [shape = 'u8[4096]{0}', space=vmem, size = 0x1000, scoped, tag = 'output window, operand 0, single buffered']
    %16 = vsyncpa [#allocation3], 0
    %17 = vsyncpa [#allocation6], 0
    %18 = vsyncpa [#allocation9], 0
    %19 = vsyncpa [#allocation12], 0
    %20 = vsyncpa [#allocation4], 0
    // Predicated region
    $region2: #{tpu_custom_call.1} parent=1 // pred_check
      _
    $region3: #{tpu_custom_call.1} parent=1 // pred_check_branch
      %22 = sbr.rel (0) target = $region5
    $region4: #{tpu_custom_call.1} parent=1 // pred_region
      %s24 = ssub.s32 128, 128
      %25 = vsyncadd [#allocation3], %s24
      %s27 = sshll.u32 [#allocation2], 4
      %s28 = int_to_ptr.vmem [resolvable:$true] %s27
      %30 = dma.hbm_to_vmem [thread:$0]  %s0, 128, %s28, [#allocation3]
    $region5: #{tpu_custom_call.1} parent=1 // pred_fallthru
      _
    // Predicated region
    $region6: #{tpu_custom_call.1} parent=1 // pred_check
      _
    $region7: #{tpu_custom_call.1} parent=1 // pred_check_branch
      %32 = sbr.rel (0) target = $region9
    $region8: #{tpu_custom_call.1} parent=1 // pred_region
      %s34 = ssub.s32 1024, 1024
      %35 = vsyncadd [#allocation6], %s34
      %s36 = sshll.u32 [#allocation5], 4
      %s37 = int_to_ptr.vmem [resolvable:$true] %s36
      %42 = dma.hbm_to_vmem [thread:$0]  %s1, 1024, %s37, [#allocation6], 256, 256, 16
    $region9: #{tpu_custom_call.1} parent=1 // pred_fallthru
      _
    // Predicated region
    $region10: #{tpu_custom_call.1} parent=1 // pred_check
      _
    $region11: #{tpu_custom_call.1} parent=1 // pred_check_branch
      %44 = sbr.rel (0) target = $region13
    $region12: #{tpu_custom_call.1} parent=1 // pred_region
      _
    $region13: #{tpu_custom_call.1} parent=1 // pred_fallthru
      _
    // Predicated region
    $region14: #{tpu_custom_call.1} parent=1 // pred_check
      _
    $region15: #{tpu_custom_call.1} parent=1 // pred_check_branch
      %46 = sbr.rel (0) target = $region17
    $region16: #{tpu_custom_call.1} parent=1 // pred_region
      %s48 = ssub.s32 8192, 8192
      %49 = vsyncadd [#allocation6], %s48
      %s50 = sshll.u32 [#allocation7], 4
      %s51 = int_to_ptr.vmem [resolvable:$true] %s50
      %56 = dma.hbm_to_vmem [thread:$0]  %s3, 8192, %s51, [#allocation6], 256, 256, 16
    $region17: #{tpu_custom_call.1} parent=1 // pred_fallthru
      _
    // Predicated region
    $region18: #{tpu_custom_call.1} parent=1 // pred_check
      _
    $region19: #{tpu_custom_call.1} parent=1 // pred_check_branch
      %58 = sbr.rel (0) target = $region21
    $region20: #{tpu_custom_call.1} parent=1 // pred_region
      _
    $region21: #{tpu_custom_call.1} parent=1 // pred_fallthru
      _
    // Predicated region
    $region22: #{tpu_custom_call.1} parent=1 // pred_check
      _
    $region23: #{tpu_custom_call.1} parent=1 // pred_check_branch
      %60 = sbr.rel (0) target = $region25
    $region24: #{tpu_custom_call.1} parent=1 // pred_region
      %s62 = ssub.s32 4096, 4096
      %63 = vsyncadd [#allocation9], %s62
      %s64 = sshll.u32 [#allocation8], 4
      %s65 = int_to_ptr.vmem [resolvable:$true] %s64
      %70 = dma.hbm_to_vmem [thread:$0]  %s5, 4096, %s65, [#allocation9], 128, 128, 8
    $region25: #{tpu_custom_call.1} parent=1 // pred_fallthru
      _
    // Predicated region
    $region26: #{tpu_custom_call.1} parent=1 // pred_check
      _
    $region27: #{tpu_custom_call.1} parent=1 // pred_check_branch
      %72 = sbr.rel (0) target = $region29
    $region28: #{tpu_custom_call.1} parent=1 // pred_region
      _
    $region29: #{tpu_custom_call.1} parent=1 // pred_fallthru
      _
    // Predicated region
    $region30: #{tpu_custom_call.1} parent=1 // pred_check
      _
    $region31: #{tpu_custom_call.1} parent=1 // pred_check_branch
      %74 = sbr.rel (0) target = $region33
    $region32: #{tpu_custom_call.1} parent=1 // pred_region
      %s76 = ssub.s32 2048, 2048
      %77 = vsyncadd [#allocation9], %s76
      %s78 = sshll.u32 [#allocation10], 4
      %s79 = int_to_ptr.vmem [resolvable:$true] %s78
      %84 = dma.hbm_to_vmem [thread:$0]  %s7, 2048, %s79, [#allocation9], 128, 128, 8
    $region33: #{tpu_custom_call.1} parent=1 // pred_fallthru
      _
    // Predicated region
    $region34: #{tpu_custom_call.1} parent=1 // pred_check
      _
    $region35: #{tpu_custom_call.1} parent=1 // pred_check_branch
      %86 = sbr.rel (0) target = $region37
    $region36: #{tpu_custom_call.1} parent=1 // pred_region
      _
    $region37: #{tpu_custom_call.1} parent=1 // pred_fallthru
      _
    // Predicated region
    $region38: #{tpu_custom_call.1} parent=1 // pred_check
      _
    $region39: #{tpu_custom_call.1} parent=1 // pred_check_branch
      %88 = sbr.rel (0) target = $region41
    $region40: #{tpu_custom_call.1} parent=1 // pred_region
      %s90 = ssub.s32 2048, 2048
      %91 = vsyncadd [#allocation12], %s90
      %s92 = sshll.u32 [#allocation11], 4
      %s93 = int_to_ptr.vmem [resolvable:$true] %s92
      %98 = dma.hbm_to_vmem [thread:$0]  %s9, 2048, %s93, [#allocation12], 128, 128, 8
    $region41: #{tpu_custom_call.1} parent=1 // pred_fallthru
      _
    // Predicated region
    $region42: #{tpu_custom_call.1} parent=1 // pred_check
      _
    $region43: #{tpu_custom_call.1} parent=1 // pred_check_branch
      %100 = sbr.rel (0) target = $region45
    $region44: #{tpu_custom_call.1} parent=1 // pred_region
      _
    $region45: #{tpu_custom_call.1} parent=1 // pred_fallthru
      _
    // Predicated region
    $region46: #{tpu_custom_call.1} parent=1 // pred_check
      _
    $region47: #{tpu_custom_call.1} parent=1 // pred_check_branch
      %102 = sbr.rel (0) target = $region49
    $region48: #{tpu_custom_call.1} parent=1 // pred_region
      %103 = dma.done [#allocation3], 128
    $region49: #{tpu_custom_call.1} parent=1 // pred_fallthru
      _
    // Predicated region
    $region50: #{tpu_custom_call.1} parent=1 // pred_check
      _
    $region51: #{tpu_custom_call.1} parent=1 // pred_check_branch
      %105 = sbr.rel (0) target = $region53
    $region52: #{tpu_custom_call.1} parent=1 // pred_region
      %106 = dma.done [#allocation6], 1024
    $region53: #{tpu_custom_call.1} parent=1 // pred_fallthru
      _
    // Predicated region
    $region54: #{tpu_custom_call.1} parent=1 // pred_check
      _
    $region55: #{tpu_custom_call.1} parent=1 // pred_check_branch
      %108 = sbr.rel (0) target = $region57
    $region56: #{tpu_custom_call.1} parent=1 // pred_region
      %109 = dma.done [#allocation6], 8192
    $region57: #{tpu_custom_call.1} parent=1 // pred_fallthru
      _
    // Predicated region
    $region58: #{tpu_custom_call.1} parent=1 // pred_check
      _
    $region59: #{tpu_custom_call.1} parent=1 // pred_check_branch
      %111 = sbr.rel (0) target = $region61
    $region60: #{tpu_custom_call.1} parent=1 // pred_region
      %112 = dma.done [#allocation9], 4096
    $region61: #{tpu_custom_call.1} parent=1 // pred_fallthru
      _
    // Predicated region
    $region62: #{tpu_custom_call.1} parent=1 // pred_check
      _
    $region63: #{tpu_custom_call.1} parent=1 // pred_check_branch
      %114 = sbr.rel (0) target = $region65
    $region64: #{tpu_custom_call.1} parent=1 // pred_region
      %115 = dma.done [#allocation9], 2048
    $region65: #{tpu_custom_call.1} parent=1 // pred_fallthru
      _
    // Predicated region
    $region66: #{tpu_custom_call.1} parent=1 // pred_check
      _
    $region67: #{tpu_custom_call.1} parent=1 // pred_check_branch
      %117 = sbr.rel (0) target = $region69
    $region68: #{tpu_custom_call.1} parent=1 // pred_region
      %118 = dma.done [#allocation12], 2048
    $region69: #{tpu_custom_call.1} parent=1 // pred_fallthru
      _
    %v119 = vld [vmem:[#allocation2] sm:$0xff]
    %v120 = vld [vmem:[#allocation5] sm:$0xff]
    %v121 = vld [vmem:[#allocation5 + $0x8] sm:$0xff]
    %v122 = vld [vmem:[#allocation5 + $0x10] sm:$0xff]
    %v123 = vld [vmem:[#allocation5 + $0x18] sm:$0xff]
    %v124 = vld [vmem:[#allocation5 + $0x20] sm:$0xff]
    %v125 = vld [vmem:[#allocation5 + $0x28] sm:$0xff]
    %v126 = vld [vmem:[#allocation5 + $0x30] sm:$0xff]
    %v127 = vld [vmem:[#allocation5 + $0x38] sm:$0xff]
    %v128 = vld [vmem:[%s2] sm:$0x3]
    %v130 = vlaneseq
    %v131 = vshrl.u32 %v130, 7
    %v132 = vsub.s32 0, %v131
    %v133 = vrot.slane %v128, %v132
    %v134 = vlaneseq
    %v135 = vshrl.u32 %v134, 7
    %v136 = vsub.s32 1, %v135
    %v137 = vrot.slane %v128, %v136
    %vm140 = vcmask 261120
    %v142 = vsel %vm140, %v119, 0
    %144 = vmatprep.subr.mxu0 %v121
    %145 = vmatpush1.msra.mxu0 %v120
    %146 = vmatprep.subr.mxu0 %v123
    %147 = vmatpush1.msra.mxu0 %v122
    %148 = vmatprep.subr.mxu0 %v125
    %149 = vmatpush1.msra.mxu0 %v124
    %150 = vmatprep.subr.mxu0 %v127
    %151 = vmatpush1.msra.mxu0 %v126
    %152 = vmatprep.subr.mxu0 0.0
    %153 = vmatpush1.msra.mxu0 0.0
    %154 = vmatprep.subr.mxu0 0.0
    %155 = vmatpush1.msra.mxu0 0.0
    %156 = vmatprep.subr.mxu0 0.0
    %157 = vmatpush1.msra.mxu0 0.0
    %158 = vmatprep.subr.mxu0 0.0
    %159 = vmatpush1.msra.mxu0 0.0
    %160 = vmatprep.subr.mxu0 0.0
    %161 = vmatpush1.msra.mxu0 0.0
    %162 = vmatprep.subr.mxu0 0.0
    %163 = vmatpush1.msra.mxu0 0.0
    %164 = vmatprep.subr.mxu0 0.0
    %165 = vmatpush1.msra.mxu0 0.0
    %166 = vmatprep.subr.mxu0 0.0
    %167 = vmatpush1.msra.mxu0 0.0
    %168 = vmatprep.subr.mxu0 0.0
    %169 = vmatpush1.msra.mxu0 0.0
    %170 = vmatprep.subr.mxu0 0.0
    %171 = vmatpush1.msra.mxu0 0.0
    %172 = vmatprep.subr.mxu0 0.0
    %173 = vmatpush1.msra.mxu0 0.0
    %174 = vmatprep.subr.mxu0 0.0
    %175 = vmatpush1.msra.mxu0 0.0
    %176 = vmatprep.subr.mxu0 0.0
    %177 = vmatpush1.msra.mxu0 0.0
    %178 = vmatprep.subr.mxu0 0.0
    %179 = vmatpush1.msra.mxu0 0.0
    %180 = vmatprep.subr.mxu0 0.0
    %181 = vmatpush1.msra.mxu0 0.0
    %182 = vmatprep.subr.mxu0 0.0
    %183 = vmatpush1.msra.mxu0 0.0
    %184 = vmatprep.subr.mxu0 0.0
    %185 = vmatpush1.msra.mxu0 0.0
    %186 = vmatprep.subr.mxu0 0.0
    %187 = vmatpush1.msra.mxu0 0.0
    %188 = vmatprep.subr.mxu0 0.0
    %189 = vmatpush1.msra.mxu0 0.0
    %190 = vmatprep.subr.mxu0 0.0
    %191 = vmatpush1.msra.mxu0 0.0
    %192 = vmatprep.subr.mxu0 0.0
    %193 = vmatpush1.msra.mxu0 0.0
    %194 = vmatprep.subr.mxu0 0.0
    %195 = vmatpush1.msra.mxu0 0.0
    %196 = vmatprep.subr.mxu0 0.0
    %197 = vmatpush1.msra.mxu0 0.0
    %198 = vmatprep.subr.mxu0 0.0
    %199 = vmatpush1.msra.mxu0 0.0
    %200 = vmatprep.subr.mxu0 0.0
    %201 = vmatpush1.msra.mxu0 0.0
    %202 = vmatprep.subr.mxu0 0.0
    %203 = vmatpush1.msra.mxu0 0.0
    %204 = vmatprep.subr.mxu0 0.0
    %205 = vmatpush1.msra.mxu0 0.0
    %206 = vmatprep.subr.mxu0 0.0
    %207 = vmatpush1.msra.mxu0 0.0
    %208 = vmatprep.mubr.f32.mxu0 0.0
    %209 = vmatmul.mubr.f32.gmra.mrb[0].mxu0 %v142
    %v210 = vpop.f32.mrb[0].mxu0
    %v211 = vadd.f32 %v133, %v210
    %v212 = vpop.f32.mrb[0].mxu0
    %v213 = vadd.f32 %v137, %v212
    %214 = vdwg.mxu0
    %v215 = vmax.f32 %v211, 0.0
    %v216 = vmax.f32 %v213, 0.0
    %v217 = vld [vmem:[#allocation7] sm:$0xff]
    %v218 = vld [vmem:[#allocation7 + $0x8] sm:$0xff]
    %v219 = vld [vmem:[#allocation7 + $0x10] sm:$0xff]
    %v220 = vld [vmem:[#allocation7 + $0x18] sm:$0xff]
    %v221 = vld [vmem:[#allocation7 + $0x20] sm:$0xff]
    %v222 = vld [vmem:[#allocation7 + $0x28] sm:$0xff]
    %v223 = vld [vmem:[#allocation7 + $0x30] sm:$0xff]
    %v224 = vld [vmem:[#allocation7 + $0x38] sm:$0xff]
    %v225 = vld [vmem:[#allocation7 + $0x40] sm:$0xff]
    %v226 = vld [vmem:[#allocation7 + $0x48] sm:$0xff]
    %v227 = vld [vmem:[#allocation7 + $0x50] sm:$0xff]
    %v228 = vld [vmem:[#allocation7 + $0x58] sm:$0xff]
    %v229 = vld [vmem:[#allocation7 + $0x60] sm:$0xff]
    %v230 = vld [vmem:[#allocation7 + $0x68] sm:$0xff]
    %v231 = vld [vmem:[#allocation7 + $0x70] sm:$0xff]
    %v232 = vld [vmem:[#allocation7 + $0x78] sm:$0xff]
    %v233 = vld [vmem:[#allocation7 + $0x80] sm:$0xff]
    %v234 = vld [vmem:[#allocation7 + $0x88] sm:$0xff]
    %v235 = vld [vmem:[#allocation7 + $0x90] sm:$0xff]
    %v236 = vld [vmem:[#allocation7 + $0x98] sm:$0xff]
    %v237 = vld [vmem:[#allocation7 + $0xa0] sm:$0xff]
    %v238 = vld [vmem:[#allocation7 + $0xa8] sm:$0xff]
    %v239 = vld [vmem:[#allocation7 + $0xb0] sm:$0xff]
    %v240 = vld [vmem:[#allocation7 + $0xb8] sm:$0xff]
    %v241 = vld [vmem:[#allocation7 + $0xc0] sm:$0xff]
    %v242 = vld [vmem:[#allocation7 + $0xc8] sm:$0xff]
    %v243 = vld [vmem:[#allocation7 + $0xd0] sm:$0xff]
    %v244 = vld [vmem:[#allocation7 + $0xd8] sm:$0xff]
    %v245 = vld [vmem:[#allocation7 + $0xe0] sm:$0xff]
    %v246 = vld [vmem:[#allocation7 + $0xe8] sm:$0xff]
    %v247 = vld [vmem:[#allocation7 + $0xf0] sm:$0xff]
    %v248 = vld [vmem:[#allocation7 + $0xf8] sm:$0xff]
    %v249 = vld [vmem:[#allocation7 + $0x100] sm:$0xff]
    %v250 = vld [vmem:[#allocation7 + $0x108] sm:$0xff]
    %v251 = vld [vmem:[#allocation7 + $0x110] sm:$0xff]
    %v252 = vld [vmem:[#allocation7 + $0x118] sm:$0xff]
    %v253 = vld [vmem:[#allocation7 + $0x120] sm:$0xff]
    %v254 = vld [vmem:[#allocation7 + $0x128] sm:$0xff]
    %v255 = vld [vmem:[#allocation7 + $0x130] sm:$0xff]
    %v256 = vld [vmem:[#allocation7 + $0x138] sm:$0xff]
    %v257 = vld [vmem:[#allocation7 + $0x140] sm:$0xff]
    %v258 = vld [vmem:[#allocation7 + $0x148] sm:$0xff]
    %v259 = vld [vmem:[#allocation7 + $0x150] sm:$0xff]
    %v260 = vld [vmem:[#allocation7 + $0x158] sm:$0xff]
    %v261 = vld [vmem:[#allocation7 + $0x160] sm:$0xff]
    %v262 = vld [vmem:[#allocation7 + $0x168] sm:$0xff]
    %v263 = vld [vmem:[#allocation7 + $0x170] sm:$0xff]
    %v264 = vld [vmem:[#allocation7 + $0x178] sm:$0xff]
    %v265 = vld [vmem:[#allocation7 + $0x180] sm:$0xff]
    %v266 = vld [vmem:[#allocation7 + $0x188] sm:$0xff]
    %v267 = vld [vmem:[#allocation7 + $0x190] sm:$0xff]
    %v268 = vld [vmem:[#allocation7 + $0x198] sm:$0xff]
    %v269 = vld [vmem:[#allocation7 + $0x1a0] sm:$0xff]
    %v270 = vld [vmem:[#allocation7 + $0x1a8] sm:$0xff]
    %v271 = vld [vmem:[#allocation7 + $0x1b0] sm:$0xff]
    %v272 = vld [vmem:[#allocation7 + $0x1b8] sm:$0xff]
    %v273 = vld [vmem:[#allocation7 + $0x1c0] sm:$0xff]
    %v274 = vld [vmem:[#allocation7 + $0x1c8] sm:$0xff]
    %v275 = vld [vmem:[#allocation7 + $0x1d0] sm:$0xff]
    %v276 = vld [vmem:[#allocation7 + $0x1d8] sm:$0xff]
    %v277 = vld [vmem:[#allocation7 + $0x1e0] sm:$0xff]
    %v278 = vld [vmem:[#allocation7 + $0x1e8] sm:$0xff]
    %v279 = vld [vmem:[#allocation7 + $0x1f0] sm:$0xff]
    %v280 = vld [vmem:[#allocation7 + $0x1f8] sm:$0xff]
    %v281 = vld [vmem:[%s4] sm:$0x3]
    %v283 = vlaneseq
    %v284 = vshrl.u32 %v283, 7
    %v285 = vsub.s32 0, %v284
    %v286 = vrot.slane %v281, %v285
    %v287 = vlaneseq
    %v288 = vshrl.u32 %v287, 7
    %v289 = vsub.s32 1, %v288
    %v290 = vrot.slane %v281, %v289
    %293 = vmatprep.subr.mxu0 %v218
    %294 = vmatpush1.msra.mxu0 %v217
    %295 = vmatprep.subr.mxu0 %v220
    %296 = vmatpush1.msra.mxu0 %v219
    %297 = vmatprep.subr.mxu0 %v222
    %298 = vmatpush1.msra.mxu0 %v221
    %299 = vmatprep.subr.mxu0 %v224
    %300 = vmatpush1.msra.mxu0 %v223
    %301 = vmatprep.subr.mxu0 %v226
    %302 = vmatpush1.msra.mxu0 %v225
    %303 = vmatprep.subr.mxu0 %v228
    %304 = vmatpush1.msra.mxu0 %v227
    %305 = vmatprep.subr.mxu0 %v230
    %306 = vmatpush1.msra.mxu0 %v229
    %307 = vmatprep.subr.mxu0 %v232
    %308 = vmatpush1.msra.mxu0 %v231
    %309 = vmatprep.subr.mxu0 %v234
    %310 = vmatpush1.msra.mxu0 %v233
    %311 = vmatprep.subr.mxu0 %v236
    %312 = vmatpush1.msra.mxu0 %v235
    %313 = vmatprep.subr.mxu0 %v238
    %314 = vmatpush1.msra.mxu0 %v237
    %315 = vmatprep.subr.mxu0 %v240
    %316 = vmatpush1.msra.mxu0 %v239
    %317 = vmatprep.subr.mxu0 %v242
    %318 = vmatpush1.msra.mxu0 %v241
    %319 = vmatprep.subr.mxu0 %v244
    %320 = vmatpush1.msra.mxu0 %v243
    %321 = vmatprep.subr.mxu0 %v246
    %322 = vmatpush1.msra.mxu0 %v245
    %323 = vmatprep.subr.mxu0 %v248
    %324 = vmatpush1.msra.mxu0 %v247
    %325 = vmatprep.subr.mxu0 %v250
    %326 = vmatpush1.msra.mxu0 %v249
    %327 = vmatprep.subr.mxu0 %v252
    %328 = vmatpush1.msra.mxu0 %v251
    %329 = vmatprep.subr.mxu0 %v254
    %330 = vmatpush1.msra.mxu0 %v253
    %331 = vmatprep.subr.mxu0 %v256
    %332 = vmatpush1.msra.mxu0 %v255
    %333 = vmatprep.subr.mxu0 %v258
    %334 = vmatpush1.msra.mxu0 %v257
    %335 = vmatprep.subr.mxu0 %v260
    %336 = vmatpush1.msra.mxu0 %v259
    %337 = vmatprep.subr.mxu0 %v262
    %338 = vmatpush1.msra.mxu0 %v261
    %339 = vmatprep.subr.mxu0 %v264
    %340 = vmatpush1.msra.mxu0 %v263
    %341 = vmatprep.subr.mxu0 %v266
    %342 = vmatpush1.msra.mxu0 %v265
    %343 = vmatprep.subr.mxu0 %v268
    %344 = vmatpush1.msra.mxu0 %v267
    %345 = vmatprep.subr.mxu0 %v270
    %346 = vmatpush1.msra.mxu0 %v269
    %347 = vmatprep.subr.mxu0 %v272
    %348 = vmatpush1.msra.mxu0 %v271
    %349 = vmatprep.subr.mxu0 %v274
    %350 = vmatpush1.msra.mxu0 %v273
    %351 = vmatprep.subr.mxu0 %v276
    %352 = vmatpush1.msra.mxu0 %v275
    %353 = vmatprep.subr.mxu0 %v278
    %354 = vmatpush1.msra.mxu0 %v277
    %355 = vmatprep.subr.mxu0 %v280
    %356 = vmatpush1.msra.mxu0 %v279
    %357 = vmatprep.mubr.f32.mxu0 %v216
    %358 = vmatmul.mubr.f32.gmra.mrb[0].mxu0 %v215
    %v359 = vpop.f32.mrb[0].mxu0
    %v360 = vadd.f32 %v286, %v359
    %v361 = vpop.f32.mrb[0].mxu0
    %v362 = vadd.f32 %v290, %v361
    %363 = vdwg.mxu0
    %v364 = vmax.f32 %v360, 0.0
    %v365 = vmax.f32 %v362, 0.0
    %v366 = vld [vmem:[#allocation8] sm:$0xff]
    %v367 = vld [vmem:[#allocation8 + $0x8] sm:$0xff]
    %v368 = vld [vmem:[#allocation8 + $0x10] sm:$0xff]
    %v369 = vld [vmem:[#allocation8 + $0x18] sm:$0xff]
    %v370 = vld [vmem:[#allocation8 + $0x20] sm:$0xff]
    %v371 = vld [vmem:[#allocation8 + $0x28] sm:$0xff]
    %v372 = vld [vmem:[#allocation8 + $0x30] sm:$0xff]
    %v373 = vld [vmem:[#allocation8 + $0x38] sm:$0xff]
    %v374 = vld [vmem:[#allocation8 + $0x40] sm:$0xff]
    %v375 = vld [vmem:[#allocation8 + $0x48] sm:$0xff]
    %v376 = vld [vmem:[#allocation8 + $0x50] sm:$0xff]
    %v377 = vld [vmem:[#allocation8 + $0x58] sm:$0xff]
    %v378 = vld [vmem:[#allocation8 + $0x60] sm:$0xff]
    %v379 = vld [vmem:[#allocation8 + $0x68] sm:$0xff]
    %v380 = vld [vmem:[#allocation8 + $0x70] sm:$0xff]
    %v381 = vld [vmem:[#allocation8 + $0x78] sm:$0xff]
    %v382 = vld [vmem:[#allocation8 + $0x80] sm:$0xff]
    %v383 = vld [vmem:[#allocation8 + $0x88] sm:$0xff]
    %v384 = vld [vmem:[#allocation8 + $0x90] sm:$0xff]
    %v385 = vld [vmem:[#allocation8 + $0x98] sm:$0xff]
    %v386 = vld [vmem:[#allocation8 + $0xa0] sm:$0xff]
    %v387 = vld [vmem:[#allocation8 + $0xa8] sm:$0xff]
    %v388 = vld [vmem:[#allocation8 + $0xb0] sm:$0xff]
    %v389 = vld [vmem:[#allocation8 + $0xb8] sm:$0xff]
    %v390 = vld [vmem:[#allocation8 + $0xc0] sm:$0xff]
    %v391 = vld [vmem:[#allocation8 + $0xc8] sm:$0xff]
    %v392 = vld [vmem:[#allocation8 + $0xd0] sm:$0xff]
    %v393 = vld [vmem:[#allocation8 + $0xd8] sm:$0xff]
    %v394 = vld [vmem:[#allocation8 + $0xe0] sm:$0xff]
    %v395 = vld [vmem:[#allocation8 + $0xe8] sm:$0xff]
    %v396 = vld [vmem:[#allocation8 + $0xf0] sm:$0xff]
    %v397 = vld [vmem:[#allocation8 + $0xf8] sm:$0xff]
    %v398 = vld [vmem:[%s6] sm:$0x1]
    %v400 = vlaneseq
    %v401 = vshrl.u32 %v400, 7
    %v402 = vsub.s32 0, %v401
    %v403 = vrot.slane %v398, %v402
    %405 = vmatprep.subr.mxu0 0.0
    %406 = vmatpush1.msra.mxu0 %v366
    %407 = vmatprep.subr.mxu0 0.0
    %408 = vmatpush1.msra.mxu0 %v367
    %409 = vmatprep.subr.mxu0 0.0
    %410 = vmatpush1.msra.mxu0 %v368
    %411 = vmatprep.subr.mxu0 0.0
    %412 = vmatpush1.msra.mxu0 %v369
    %413 = vmatprep.subr.mxu0 0.0
    %414 = vmatpush1.msra.mxu0 %v370
    %415 = vmatprep.subr.mxu0 0.0
    %416 = vmatpush1.msra.mxu0 %v371
    %417 = vmatprep.subr.mxu0 0.0
    %418 = vmatpush1.msra.mxu0 %v372
    %419 = vmatprep.subr.mxu0 0.0
    %420 = vmatpush1.msra.mxu0 %v373
    %421 = vmatprep.subr.mxu0 0.0
    %422 = vmatpush1.msra.mxu0 %v374
    %423 = vmatprep.subr.mxu0 0.0
    %424 = vmatpush1.msra.mxu0 %v375
    %425 = vmatprep.subr.mxu0 0.0
    %426 = vmatpush1.msra.mxu0 %v376
    %427 = vmatprep.subr.mxu0 0.0
    %428 = vmatpush1.msra.mxu0 %v377
    %429 = vmatprep.subr.mxu0 0.0
    %430 = vmatpush1.msra.mxu0 %v378
    %431 = vmatprep.subr.mxu0 0.0
    %432 = vmatpush1.msra.mxu0 %v379
    %433 = vmatprep.subr.mxu0 0.0
    %434 = vmatpush1.msra.mxu0 %v380
    %435 = vmatprep.subr.mxu0 0.0
    %436 = vmatpush1.msra.mxu0 %v381
    %437 = vmatprep.subr.mxu0 0.0
    %438 = vmatpush1.msra.mxu0 %v382
    %439 = vmatprep.subr.mxu0 0.0
    %440 = vmatpush1.msra.mxu0 %v383
    %441 = vmatprep.subr.mxu0 0.0
    %442 = vmatpush1.msra.mxu0 %v384
    %443 = vmatprep.subr.mxu0 0.0
    %444 = vmatpush1.msra.mxu0 %v385
    %445 = vmatprep.subr.mxu0 0.0
    %446 = vmatpush1.msra.mxu0 %v386
    %447 = vmatprep.subr.mxu0 0.0
    %448 = vmatpush1.msra.mxu0 %v387
    %449 = vmatprep.subr.mxu0 0.0
    %450 = vmatpush1.msra.mxu0 %v388
    %451 = vmatprep.subr.mxu0 0.0
    %452 = vmatpush1.msra.mxu0 %v389
    %453 = vmatprep.subr.mxu0 0.0
    %454 = vmatpush1.msra.mxu0 %v390
    %455 = vmatprep.subr.mxu0 0.0
    %456 = vmatpush1.msra.mxu0 %v391
    %457 = vmatprep.subr.mxu0 0.0
    %458 = vmatpush1.msra.mxu0 %v392
    %459 = vmatprep.subr.mxu0 0.0
    %460 = vmatpush1.msra.mxu0 %v393
    %461 = vmatprep.subr.mxu0 0.0
    %462 = vmatpush1.msra.mxu0 %v394
    %463 = vmatprep.subr.mxu0 0.0
    %464 = vmatpush1.msra.mxu0 %v395
    %465 = vmatprep.subr.mxu0 0.0
    %466 = vmatpush1.msra.mxu0 %v396
    %467 = vmatprep.subr.mxu0 0.0
    %468 = vmatpush1.msra.mxu0 %v397
    %469 = vmatprep.mubr.f32.mxu0 %v365
    %470 = vmatmul.mubr.f32.gmra.mrb[0].mxu0 %v364
    %v471 = vpop.f32.mrb[0].mxu0
    %v472 = vadd.f32 %v403, %v471
    %v473 = vpop.f32.mrb[0].mxu0
    %474 = vdwg.mxu0
    %v475 = vmax.f32 %v472, 0.0
    %v476 = vld [vmem:[#allocation10] sm:$0xff]
    %v477 = vld [vmem:[#allocation10 + $0x8] sm:$0xff]
    %v478 = vld [vmem:[#allocation10 + $0x10] sm:$0xff]
    %v479 = vld [vmem:[#allocation10 + $0x18] sm:$0xff]
    %v480 = vld [vmem:[#allocation10 + $0x20] sm:$0xff]
    %v481 = vld [vmem:[#allocation10 + $0x28] sm:$0xff]
    %v482 = vld [vmem:[#allocation10 + $0x30] sm:$0xff]
    %v483 = vld [vmem:[#allocation10 + $0x38] sm:$0xff]
    %v484 = vld [vmem:[#allocation10 + $0x40] sm:$0xff]
    %v485 = vld [vmem:[#allocation10 + $0x48] sm:$0xff]
    %v486 = vld [vmem:[#allocation10 + $0x50] sm:$0xff]
    %v487 = vld [vmem:[#allocation10 + $0x58] sm:$0xff]
    %v488 = vld [vmem:[#allocation10 + $0x60] sm:$0xff]
    %v489 = vld [vmem:[#allocation10 + $0x68] sm:$0xff]
    %v490 = vld [vmem:[#allocation10 + $0x70] sm:$0xff]
    %v491 = vld [vmem:[#allocation10 + $0x78] sm:$0xff]
    %v492 = vld [vmem:[%s8] sm:$0x1]
    %v494 = vlaneseq
    %v495 = vshrl.u32 %v494, 7
    %v496 = vsub.s32 0, %v495
    %v497 = vrot.slane %v492, %v496
    %499 = vmatprep.subr.mxu0 0.0
    %500 = vmatpush1.msra.mxu0 %v476
    %501 = vmatprep.subr.mxu0 0.0
    %502 = vmatpush1.msra.mxu0 %v477
    %503 = vmatprep.subr.mxu0 0.0
    %504 = vmatpush1.msra.mxu0 %v478
    %505 = vmatprep.subr.mxu0 0.0
    %506 = vmatpush1.msra.mxu0 %v479
    %507 = vmatprep.subr.mxu0 0.0
    %508 = vmatpush1.msra.mxu0 %v480
    %509 = vmatprep.subr.mxu0 0.0
    %510 = vmatpush1.msra.mxu0 %v481
    %511 = vmatprep.subr.mxu0 0.0
    %512 = vmatpush1.msra.mxu0 %v482
    %513 = vmatprep.subr.mxu0 0.0
    %514 = vmatpush1.msra.mxu0 %v483
    %515 = vmatprep.subr.mxu0 0.0
    %516 = vmatpush1.msra.mxu0 %v484
    %517 = vmatprep.subr.mxu0 0.0
    %518 = vmatpush1.msra.mxu0 %v485
    %519 = vmatprep.subr.mxu0 0.0
    %520 = vmatpush1.msra.mxu0 %v486
    %521 = vmatprep.subr.mxu0 0.0
    %522 = vmatpush1.msra.mxu0 %v487
    %523 = vmatprep.subr.mxu0 0.0
    %524 = vmatpush1.msra.mxu0 %v488
    %525 = vmatprep.subr.mxu0 0.0
    %526 = vmatpush1.msra.mxu0 %v489
    %527 = vmatprep.subr.mxu0 0.0
    %528 = vmatpush1.msra.mxu0 %v490
    %529 = vmatprep.subr.mxu0 0.0
    %530 = vmatpush1.msra.mxu0 %v491
    %531 = vmatprep.subr.mxu0 0.0
    %532 = vmatpush1.msra.mxu0 0.0
    %533 = vmatprep.subr.mxu0 0.0
    %534 = vmatpush1.msra.mxu0 0.0
    %535 = vmatprep.subr.mxu0 0.0
    %536 = vmatpush1.msra.mxu0 0.0
    %537 = vmatprep.subr.mxu0 0.0
    %538 = vmatpush1.msra.mxu0 0.0
    %539 = vmatprep.subr.mxu0 0.0
    %540 = vmatpush1.msra.mxu0 0.0
    %541 = vmatprep.subr.mxu0 0.0
    %542 = vmatpush1.msra.mxu0 0.0
    %543 = vmatprep.subr.mxu0 0.0
    %544 = vmatpush1.msra.mxu0 0.0
    %545 = vmatprep.subr.mxu0 0.0
    %546 = vmatpush1.msra.mxu0 0.0
    %547 = vmatprep.subr.mxu0 0.0
    %548 = vmatpush1.msra.mxu0 0.0
    %549 = vmatprep.subr.mxu0 0.0
    %550 = vmatpush1.msra.mxu0 0.0
    %551 = vmatprep.subr.mxu0 0.0
    %552 = vmatpush1.msra.mxu0 0.0
    %553 = vmatprep.subr.mxu0 0.0
    %554 = vmatpush1.msra.mxu0 0.0
    %555 = vmatprep.subr.mxu0 0.0
    %556 = vmatpush1.msra.mxu0 0.0
    %557 = vmatprep.subr.mxu0 0.0
    %558 = vmatpush1.msra.mxu0 0.0
    %559 = vmatprep.subr.mxu0 0.0
    %560 = vmatpush1.msra.mxu0 0.0
    %561 = vmatprep.subr.mxu0 0.0
    %562 = vmatpush1.msra.mxu0 0.0
    %563 = vmatprep.mubr.f32.mxu0 0.0
    %564 = vmatmul.mubr.f32.gmra.mrb[0].mxu0 %v475
    %v565 = vpop.f32.mrb[0].mxu0
    %v566 = vadd.f32 %v497, %v565
    %v567 = vpop.f32.mrb[0].mxu0
    %568 = vdwg.mxu0
    %v569 = vmax.f32 %v566, 0.0
    %v570 = vld [vmem:[#allocation11] sm:$0xff]
    %v571 = vld [vmem:[#allocation11 + $0x8] sm:$0xff]
    %v572 = vld [vmem:[#allocation11 + $0x10] sm:$0xff]
    %v573 = vld [vmem:[#allocation11 + $0x18] sm:$0xff]
    %v574 = vld [vmem:[#allocation11 + $0x20] sm:$0xff]
    %v575 = vld [vmem:[#allocation11 + $0x28] sm:$0xff]
    %v576 = vld [vmem:[#allocation11 + $0x30] sm:$0xff]
    %v577 = vld [vmem:[#allocation11 + $0x38] sm:$0xff]
    %v578 = vld [vmem:[#allocation11 + $0x40] sm:$0xff]
    %v579 = vld [vmem:[#allocation11 + $0x48] sm:$0xff]
    %v580 = vld [vmem:[#allocation11 + $0x50] sm:$0xff]
    %v581 = vld [vmem:[#allocation11 + $0x58] sm:$0xff]
    %v582 = vld [vmem:[#allocation11 + $0x60] sm:$0xff]
    %v583 = vld [vmem:[#allocation11 + $0x68] sm:$0xff]
    %v584 = vld [vmem:[#allocation11 + $0x70] sm:$0xff]
    %v585 = vld [vmem:[#allocation11 + $0x78] sm:$0xff]
    %v586 = vld [vmem:[%s10] sm:$0x1]
    %v588 = vlaneseq
    %v589 = vshrl.u32 %v588, 7
    %v590 = vsub.s32 0, %v589
    %v591 = vrot.slane %v586, %v590
    %593 = vmatprep.subr.mxu0 0.0
    %594 = vmatpush1.msra.mxu0 %v570
    %595 = vmatprep.subr.mxu0 0.0
    %596 = vmatpush1.msra.mxu0 %v571
    %597 = vmatprep.subr.mxu0 0.0
    %598 = vmatpush1.msra.mxu0 %v572
    %599 = vmatprep.subr.mxu0 0.0
    %600 = vmatpush1.msra.mxu0 %v573
    %601 = vmatprep.subr.mxu0 0.0
    %602 = vmatpush1.msra.mxu0 %v574
    %603 = vmatprep.subr.mxu0 0.0
    %604 = vmatpush1.msra.mxu0 %v575
    %605 = vmatprep.subr.mxu0 0.0
    %606 = vmatpush1.msra.mxu0 %v576
    %607 = vmatprep.subr.mxu0 0.0
    %608 = vmatpush1.msra.mxu0 %v577
    %609 = vmatprep.subr.mxu0 0.0
    %610 = vmatpush1.msra.mxu0 %v578
    %611 = vmatprep.subr.mxu0 0.0
    %612 = vmatpush1.msra.mxu0 %v579
    %613 = vmatprep.subr.mxu0 0.0
    %614 = vmatpush1.msra.mxu0 %v580
    %615 = vmatprep.subr.mxu0 0.0
    %616 = vmatpush1.msra.mxu0 %v581
    %617 = vmatprep.subr.mxu0 0.0
    %618 = vmatpush1.msra.mxu0 %v582
    %619 = vmatprep.subr.mxu0 0.0
    %620 = vmatpush1.msra.mxu0 %v583
    %621 = vmatprep.subr.mxu0 0.0
    %622 = vmatpush1.msra.mxu0 %v584
    %623 = vmatprep.subr.mxu0 0.0
    %624 = vmatpush1.msra.mxu0 %v585
    %625 = vmatprep.subr.mxu0 0.0
    %626 = vmatpush1.msra.mxu0 0.0
    %627 = vmatprep.subr.mxu0 0.0
    %628 = vmatpush1.msra.mxu0 0.0
    %629 = vmatprep.subr.mxu0 0.0
    %630 = vmatpush1.msra.mxu0 0.0
    %631 = vmatprep.subr.mxu0 0.0
    %632 = vmatpush1.msra.mxu0 0.0
    %633 = vmatprep.subr.mxu0 0.0
    %634 = vmatpush1.msra.mxu0 0.0
    %635 = vmatprep.subr.mxu0 0.0
    %636 = vmatpush1.msra.mxu0 0.0
    %637 = vmatprep.subr.mxu0 0.0
    %638 = vmatpush1.msra.mxu0 0.0
    %639 = vmatprep.subr.mxu0 0.0
    %640 = vmatpush1.msra.mxu0 0.0
    %641 = vmatprep.subr.mxu0 0.0
    %642 = vmatpush1.msra.mxu0 0.0
    %643 = vmatprep.subr.mxu0 0.0
    %644 = vmatpush1.msra.mxu0 0.0
    %645 = vmatprep.subr.mxu0 0.0
    %646 = vmatpush1.msra.mxu0 0.0
    %647 = vmatprep.subr.mxu0 0.0
    %648 = vmatpush1.msra.mxu0 0.0
    %649 = vmatprep.subr.mxu0 0.0
    %650 = vmatpush1.msra.mxu0 0.0
    %651 = vmatprep.subr.mxu0 0.0
    %652 = vmatpush1.msra.mxu0 0.0
    %653 = vmatprep.subr.mxu0 0.0
    %654 = vmatpush1.msra.mxu0 0.0
    %655 = vmatprep.subr.mxu0 0.0
    %656 = vmatpush1.msra.mxu0 0.0
    %657 = vmatprep.mubr.f32.mxu0 0.0
    %658 = vmatmul.mubr.f32.gmra.mrb[0].mxu0 %v569
    %v659 = vpop.f32.mrb[0].mxu0
    %v660 = vadd.f32 %v591, %v659
    %v661 = vpop.f32.mrb[0].mxu0
    %662 = vdwg.mxu0
    %663 = vst [vmem:[#allocation13] sm:$0xff] %v660
    // Predicated region
    $region70: #{tpu_custom_call.1} parent=1 // pred_check
      _
    $region71: #{tpu_custom_call.1} parent=1 // pred_check_branch
      %665 = sbr.rel (0) target = $region73
    $region72: #{tpu_custom_call.1} parent=1 // pred_region
      %s667 = ssub.s32 128, 128
      %668 = vsyncadd [#allocation4], %s667
      %s670 = sshll.u32 [#allocation13], 4
      %s671 = int_to_ptr.vmem [resolvable:$true] %s670
      %673 = dma.vmem_to_hbm [thread:$0]  %s671, 128, %s11, [#allocation4]
    $region73: #{tpu_custom_call.1} parent=1 // pred_fallthru
      _
    // Predicated region
    $region74: #{tpu_custom_call.1} parent=1 // pred_check
      _
    $region75: #{tpu_custom_call.1} parent=1 // pred_check_branch
      %675 = sbr.rel (0) target = $region77
    $region76: #{tpu_custom_call.1} parent=1 // pred_region
      %676 = dma.done [#allocation4], 128
    $region77: #{tpu_custom_call.1} parent=1 // pred_fallthru
      _
    %677 = vsyncpa [#allocation3], 1
    %678 = vsyncpa [#allocation6], 1
    %679 = vsyncpa [#allocation9], 1
    %680 = vsyncpa [#allocation12], 1
    %681 = vsyncpa [#allocation4], 1

</llo_original>
